<compile_context>
chip_gen: v7x
topology: tpu7x:2x2x1
jax: 0.10.0
libtpu: 0.0.40
codegen_flags: <defaults>
</compile_context>

<pallas_src>
import jax
import jax.numpy as jnp
from jax.experimental import pallas as pl
from jax.experimental.pallas import tpu as pltpu

_LANE = 128


def _round_up(x, m):
    return ((x + m - 1) // m) * m


def _pick_vmem_limit():
    """Per-generation scoped-VMEM limit with headroom for Mosaic scratch."""
    cap = 128 * 1024 * 1024
    try:
        cap = int(pltpu.get_tpu_info().vmem_capacity_bytes)
    except Exception:
        pass
    # ~3/4 of physical per-core VMEM: v7x (64 MiB/TC) -> 48 MiB, v5e/v6e -> 96 MiB.
    return min((cap * 3) // 4, 100 * 1024 * 1024)


def _spec(shape, index_map, buffers=None):
    """BlockSpec with optional buffer-count override (graceful fallback if the
    installed JAX does not expose pipeline_mode / pl.Buffered)."""
    if buffers is not None and hasattr(pl, "Buffered"):
        try:
            return pl.BlockSpec(shape, index_map, pipeline_mode=pl.Buffered(buffers))
        except TypeError:
            pass
    return pl.BlockSpec(shape, index_map)


def _pad2d(a, shape, dtype):
    a = jnp.asarray(a)
    if a.shape == shape and a.dtype == jnp.dtype(dtype):
        return a
    out = jnp.zeros(shape, dtype)
    return out.at[: a.shape[0], : a.shape[1]].set(a.astype(dtype))


def _mlp_kernel(x_ref, w1_ref, b1_ref, w3_ref, b3_ref, o_ref, acc_ref):
    """grid = (batch_tiles, hidden_chunks); hidden axis is the reduction axis."""
    k = pl.program_id(1)

    @pl.when(k == 0)
    def _init():
        acc_ref[...] = jnp.zeros_like(acc_ref)

    # fc1 chunk: (tb, d_in_p) @ (d_in_p, th) -> f32 accumulate; bias + ReLU in f32.
    h = jnp.dot(x_ref[...], w1_ref[...], preferred_element_type=jnp.float32)
    h = jnp.maximum(h + b1_ref[...], 0.0)
    # fc3 chunk: (tb, th) @ (th, d_out_p) -> accumulate into f32 scratch.
    acc_ref[...] += jnp.dot(h.astype(w3_ref.dtype), w3_ref[...],
                            preferred_element_type=jnp.float32)

    @pl.when(k == pl.num_programs(1) - 1)
    def _finalize():
        o_ref[...] = (acc_ref[...] + b3_ref[...]).astype(o_ref.dtype)


def prepare_mlp_params(w1, b1, w3, b3, *, use_bf16=True, block_h=None,
                       vmem_limit_bytes=None):
    """Pad/cast weights once (hoisted out of the per-call path).

    Layout: w1 (d_in, hidden), w3 (hidden, d_out) -- transposed vs. nn.Linear
    weight storage; the kernel computes x @ W + b. Padding with zeros is exact:
    padded hidden cols give h=0 -> ReLU 0 -> zero contribution via zero w3 rows;
    padded output cols are sliced off after the call.
    """
    d_in, hidden = w1.shape
    hidden_w, d_out = w3.shape
    assert hidden == hidden_w and b1.shape == (hidden,) and b3.shape == (d_out,)

    compute_dtype = jnp.bfloat16 if use_bf16 else jnp.float32
    if vmem_limit_bytes is None:
        vmem_limit_bytes = _pick_vmem_limit()

    d_in_p = _round_up(d_in, _LANE)
    d_out_p = _round_up(d_out, _LANE)
    h_min = _round_up(hidden, _LANE)
    itemsize = jnp.dtype(compute_dtype).itemsize

    if block_h is None:
        # Resident weights must fit ~40% of the per-core VMEM budget, otherwise
        # chunk the hidden dim (chunks are double-buffered while streaming).
        budget = int(vmem_limit_bytes * 0.4)
        if (d_in_p + d_out_p) * h_min * itemsize <= budget:
            block_h = h_min
        else:
            per_col = 2 * (d_in_p + d_out_p) * itemsize
            block_h = max(_LANE, (budget // max(per_col, 1)) // _LANE * _LANE)
    block_h = _round_up(min(block_h, h_min), _LANE)
    h_p = _round_up(hidden, block_h)

    return dict(
        w1=_pad2d(w1, (d_in_p, h_p), compute_dtype),
        w3=_pad2d(w3, (h_p, d_out_p), compute_dtype),
        b1=_pad2d(jnp.asarray(b1).reshape(1, -1), (1, h_p), jnp.float32),
        b3=_pad2d(jnp.asarray(b3).reshape(1, -1), (1, d_out_p), jnp.float32),
        d_in=d_in, d_out=d_out, d_in_p=d_in_p, d_out_p=d_out_p,
        h_p=h_p, block_h=block_h, compute_dtype=compute_dtype,
        vmem_limit_bytes=int(vmem_limit_bytes),
    )


def mlp_apply(x, params, *, block_b=256):
    """x: (B, d_in) -> (B, d_out). params from prepare_mlp_params."""
    B, d_in = x.shape
    assert d_in == params["d_in"]
    cdt = params["compute_dtype"]
    d_in_p, d_out_p = params["d_in_p"], params["d_out_p"]
    h_p, th = params["h_p"], params["block_h"]
    d_out = params["d_out"]

    # x: cast (and lane-pad only if needed).
    if d_in_p == d_in:
        x_p = x.astype(cdt)
    else:
        x_p = jnp.zeros((B, d_in_p), cdt).at[:, :d_in].set(x.astype(cdt))

    # Batch tile: MXU-granule-ish default (256), sublane granule 16 for bf16.
    sub = 16 if jnp.dtype(cdt) == jnp.dtype(jnp.bfloat16) else 8
    tb = max(sub, _round_up(min(block_b, _round_up(B, sub)), sub))
    nb = pl.cdiv(B, tb)           # no batch padding: boundary block is clipped
    n_h = h_p // th

    # Single-buffer operands whose block index never changes; double-buffer the
    # hidden-chunked weights so the next chunk's DMA overlaps compute.
    w_buf = 1 if n_h == 1 else 2

    grid_spec = pltpu.PrefetchScalarGridSpec(
        num_scalar_prefetch=0,
        grid=(nb, n_h),
        in_specs=[
            _spec((tb, d_in_p), lambda i, k: (i, 0)),                 # x tile
            _spec((d_in_p, th), lambda i, k: (0, k), buffers=w_buf),  # w1 chunk
            _spec((1, th), lambda i, k: (0, k), buffers=w_buf),       # b1 chunk
            _spec((th, d_out_p), lambda i, k: (k, 0), buffers=w_buf), # w3 chunk
            _spec((1, d_out_p), lambda i, k: (0, 0), buffers=1),      # b3
        ],
        out_specs=pl.BlockSpec((tb, d_out_p), lambda i, k: (i, 0)),
        scratch_shapes=[pltpu.VMEM((tb, d_out_p), jnp.float32)],
    )

    out_p = pl.pallas_call(
        _mlp_kernel,
        out_shape=jax.ShapeDtypeStruct((B, d_out_p), x.dtype),
        grid_spec=grid_spec,
        compiler_params=pltpu.CompilerParams(
            dimension_semantics=("parallel", "arbitrary"),
            vmem_limit_bytes=params["vmem_limit_bytes"],
        ),
    )(x_p, params["w1"], params["b1"], params["w3"], params["b3"])

    return out_p if d_out_p == d_out else out_p[:, :d_out]


def mlp_forward(x, w1, b1, w3, b3, *, block_b=256, block_h=None, use_bf16=True,
                vmem_limit_bytes=None):
    """Convenience one-shot wrapper (prefer prepare_mlp_params + mlp_apply)."""
    params = prepare_mlp_params(w1, b1, w3, b3, use_bf16=use_bf16,
                                block_h=block_h, vmem_limit_bytes=vmem_limit_bytes)
    return mlp_apply(x, params, block_b=block_b)


def mlp_reference(x, w1, b1, w3, b3):
    h = jnp.maximum(x @ w1 + b1, 0.0)
    return h @ w3 + b3


if __name__ == "__main__":
    # Small shapes consistent with the module (Linear -> ReLU -> Linear).
    B, input_dim, hidden_dim, output_dim = 8, 16, 32, 8

    key = jax.random.PRNGKey(0)
    keys = jax.random.split(key, 6)

    def int_vals(k, shape):
        # Small-integer-valued f32 data: every intermediate/final value is exactly
        # representable in bf16 and f32, so the checks are independent of the
        # MXU pass structure and of the operand dtype (precision-agnostic).
        return jax.random.randint(k, shape, -2, 3).astype(jnp.float32)

    x = int_vals(keys[0], (B, input_dim))
    w1 = int_vals(keys[1], (input_dim, hidden_dim))
    b1 = int_vals(keys[2], (hidden_dim,))
    w3 = int_vals(keys[3], (hidden_dim, output_dim))
    b3 = int_vals(keys[4], (output_dim,))

    ref = mlp_reference(x, w1, b1, w3, b3)

    # f32 operand path (single hidden chunk, single batch tile).
    params_f32 = prepare_mlp_params(w1, b1, w3, b3, use_bf16=False)
    out = jax.block_until_ready(mlp_apply(x, params_f32))
    assert out.shape == (B, output_dim)
    assert jnp.allclose(out, ref, atol=1e-6, rtol=0), "f32 path mismatch"

    # bf16 operand path (default): exact on integer data thanks to f32 accumulation.
    params_bf16 = prepare_mlp_params(w1, b1, w3, b3, use_bf16=True)
    out_bf16 = jax.block_until_ready(mlp_apply(x, params_bf16))
    assert jnp.allclose(out_bf16, ref, atol=1e-6, rtol=0), "bf16 path mismatch"

    # Multi-tile batch grid with a non-tile-multiple batch (boundary block clipped,
    # no batch padding / output slab slice).
    B2 = 300
    x2 = int_vals(jax.random.PRNGKey(1), (B2, input_dim))
    out2 = jax.block_until_ready(mlp_apply(x2, params_f32, block_b=128))
    assert out2.shape == (B2, output_dim)
    assert jnp.allclose(out2, mlp_reference(x2, w1, b1, w3, b3),
                        atol=1e-6, rtol=0), "multi-batch-tile path mismatch"

    # Hidden-dim chunked path (trailing 'arbitrary' grid axis + f32 accumulator).
    hidden2 = 256
    k5, k6, k7 = jax.random.split(keys[5], 3)
    w1c = int_vals(k5, (input_dim, hidden2))
    b1c = int_vals(k6, (hidden2,))
    w3c = int_vals(k7, (hidden2, output_dim))
    params_chunk = prepare_mlp_params(w1c, b1c, w3c, b3, use_bf16=False,
                                      block_h=128)
    outc = jax.block_until_ready(mlp_apply(x, params_chunk))
    assert jnp.allclose(outc, mlp_reference(x, w1c, b1c, w3c, b3),
                        atol=1e-6, rtol=0), "hidden-chunked path mismatch"

    print("KERNEL_OK")
</pallas_src>

<mosaic_0001>
module attributes {stable_mosaic.version = 11 : i64} {
  func.func @_mlp_kernel(%arg0: i32, %arg1: i32, %arg2: memref<8x128xf32, #tpu.memory_space<vmem>>, %arg3: memref<128x128xf32, #tpu.memory_space<vmem>>, %arg4: memref<1x128xf32, #tpu.memory_space<vmem>>, %arg5: memref<128x128xf32, #tpu.memory_space<vmem>>, %arg6: memref<1x128xf32, #tpu.memory_space<vmem>>, %arg7: memref<8x128xf32, #tpu.memory_space<vmem>>, %arg8: memref<8x128xf32, #tpu.memory_space<vmem>>) attributes {dimension_semantics = [#tpu.dimension_semantics<parallel>, #tpu.dimension_semantics<arbitrary>], iteration_bounds = array<i64: 1, 1>, scalar_prefetch = 0 : i64, scratch_operands = 1 : i64, tpu.core_type = #tpu.core_type<tc>, window_params = [{transform_indices = @transform_0, window_bounds = array<i64: 8, 128>}, {pipeline_mode = #tpu.pipeline_mode<synchronous>, transform_indices = @transform_1, window_bounds = array<i64: 128, 128>}, {pipeline_mode = #tpu.pipeline_mode<synchronous>, transform_indices = @transform_2, window_bounds = array<i64: 1, 128>}, {pipeline_mode = #tpu.pipeline_mode<synchronous>, transform_indices = @transform_3, window_bounds = array<i64: 128, 128>}, {pipeline_mode = #tpu.pipeline_mode<synchronous>, transform_indices = @transform_4, window_bounds = array<i64: 1, 128>}, {transform_indices = @transform_5, window_bounds = array<i64: 8, 128>}]} {
    %c0_i32 = arith.constant 0 : i32
    %0 = arith.cmpi eq, %arg1, %c0_i32 : i32
    %1 = arith.extui %0 : i1 to i32
    %c0_i32_0 = arith.constant 0 : i32
    %2 = arith.cmpi ne, %1, %c0_i32_0 : i32
    scf.if %2 {
      %cst_16 = arith.constant 0.000000e+00 : f32
      %19 = vector.broadcast %cst_16 : f32 to vector<8x128xf32>
      %c0_17 = arith.constant 0 : index
      %c0_18 = arith.constant 0 : index
      %20 = vector.load %arg8[%c0_17, %c0_18] : memref<8x128xf32, #tpu.memory_space<vmem>>, vector<8x128xf32>
      tpu.vector_store %arg8[%c0_17, %c0_18], %19 {strides = array<i32>} : memref<8x128xf32, #tpu.memory_space<vmem>>, vector<8x128xf32>,
    } else {
    }
    %c0 = arith.constant 0 : index
    %c0_1 = arith.constant 0 : index
    %3 = vector.load %arg2[%c0, %c0_1] : memref<8x128xf32, #tpu.memory_space<vmem>>, vector<8x128xf32>
    %c0_2 = arith.constant 0 : index
    %c0_3 = arith.constant 0 : index
    %4 = vector.load %arg3[%c0_2, %c0_3] : memref<128x128xf32, #tpu.memory_space<vmem>>, vector<128x128xf32>
    %cst = arith.constant dense<0.000000e+00> : vector<8x128xf32>
    %5 = tpu.matmul %3, %4, %cst {dimension_numbers = #tpu.dot_dimension_numbers<[1], [0], [0], [1], [0, 0, 1, 1], [], []>} : vector<8x128xf32>, vector<128x128xf32>, vector<8x128xf32> -> vector<8x128xf32>
    %c0_4 = arith.constant 0 : index
    %c0_5 = arith.constant 0 : index
    %6 = vector.load %arg4[%c0_4, %c0_5] : memref<1x128xf32, #tpu.memory_space<vmem>>, vector<1x128xf32>
    %7 = vector.broadcast %6 : vector<1x128xf32> to vector<8x128xf32>
    %8 = arith.addf %5, %7 : vector<8x128xf32>
    %cst_6 = arith.constant 0.000000e+00 : f32
    %9 = vector.broadcast %cst_6 : f32 to vector<8x128xf32>
    %10 = arith.maximumf %8, %9 : vector<8x128xf32>
    %c0_7 = arith.constant 0 : index
    %c0_8 = arith.constant 0 : index
    %11 = vector.load %arg8[%c0_7, %c0_8] : memref<8x128xf32, #tpu.memory_space<vmem>>, vector<8x128xf32>
    %c0_9 = arith.constant 0 : index
    %c0_10 = arith.constant 0 : index
    %12 = vector.load %arg5[%c0_9, %c0_10] : memref<128x128xf32, #tpu.memory_space<vmem>>, vector<128x128xf32>
    %cst_11 = arith.constant dense<0.000000e+00> : vector<8x128xf32>
    %13 = tpu.matmul %10, %12, %cst_11 {dimension_numbers = #tpu.dot_dimension_numbers<[1], [0], [0], [1], [0, 0, 1, 1], [], []>} : vector<8x128xf32>, vector<128x128xf32>, vector<8x128xf32> -> vector<8x128xf32>
    %14 = arith.addf %11, %13 : vector<8x128xf32>
    %c0_12 = arith.constant 0 : index
    %c0_13 = arith.constant 0 : index
    %15 = vector.load %arg8[%c0_12, %c0_13] : memref<8x128xf32, #tpu.memory_space<vmem>>, vector<8x128xf32>
    tpu.vector_store %arg8[%c0_12, %c0_13], %14 {strides = array<i32>} : memref<8x128xf32, #tpu.memory_space<vmem>>, vector<8x128xf32>,
    %c0_i32_14 = arith.constant 0 : i32
    %16 = arith.cmpi eq, %arg1, %c0_i32_14 : i32
    %17 = arith.extui %16 : i1 to i32
    %c0_i32_15 = arith.constant 0 : i32
    %18 = arith.cmpi ne, %17, %c0_i32_15 : i32
    scf.if %18 {
      %c0_16 = arith.constant 0 : index
      %c0_17 = arith.constant 0 : index
      %19 = vector.load %arg8[%c0_16, %c0_17] : memref<8x128xf32, #tpu.memory_space<vmem>>, vector<8x128xf32>
      %c0_18 = arith.constant 0 : index
      %c0_19 = arith.constant 0 : index
      %20 = vector.load %arg6[%c0_18, %c0_19] : memref<1x128xf32, #tpu.memory_space<vmem>>, vector<1x128xf32>
      %21 = vector.broadcast %20 : vector<1x128xf32> to vector<8x128xf32>
      %22 = arith.addf %19, %21 : vector<8x128xf32>
      %c0_20 = arith.constant 0 : index
      %c0_21 = arith.constant 0 : index
      %23 = vector.load %arg7[%c0_20, %c0_21] : memref<8x128xf32, #tpu.memory_space<vmem>>, vector<8x128xf32>
      tpu.vector_store %arg7[%c0_20, %c0_21], %22 {strides = array<i32>} : memref<8x128xf32, #tpu.memory_space<vmem>>, vector<8x128xf32>,
    } else {
    }
    return
  }
  func.func @transform_0(%arg0: i32, %arg1: i32) -> (i32, i32) {
    %c0_i32 = arith.constant 0 : i32
    %c0_i32_0 = arith.constant 0 : i32
    return %arg0, %c0_i32 : i32, i32
  }
  func.func @transform_1(%arg0: i32, %arg1: i32) -> (i32, i32) {
    %c0_i32 = arith.constant 0 : i32
    %c0_i32_0 = arith.constant 0 : i32
    return %c0_i32, %arg1 : i32, i32
  }
  func.func @transform_2(%arg0: i32, %arg1: i32) -> (i32, i32) {
    %c0_i32 = arith.constant 0 : i32
    %c0_i32_0 = arith.constant 0 : i32
    return %c0_i32, %arg1 : i32, i32
  }
  func.func @transform_3(%arg0: i32, %arg1: i32) -> (i32, i32) {
    %c0_i32 = arith.constant 0 : i32
    %c0_i32_0 = arith.constant 0 : i32
    return %arg1, %c0_i32 : i32, i32
  }
  func.func @transform_4(%arg0: i32, %arg1: i32) -> (i32, i32) {
    %c0_i32 = arith.constant 0 : i32
    %c0_i32_0 = arith.constant 0 : i32
    %c0_i32_1 = arith.constant 0 : i32
    return %c0_i32, %c0_i32_0 : i32, i32
  }
  func.func @transform_5(%arg0: i32, %arg1: i32) -> (i32, i32) {
    %c0_i32 = arith.constant 0 : i32
    %c0_i32_0 = arith.constant 0 : i32
    return %arg0, %c0_i32 : i32, i32
  }
}

</mosaic_0001>

<llo_original>
// kernel: tpu_custom_call.1
$region0: #{tpu_custom_call.1}
  #allocation0 [shape = 'u32[]', space=smem, size = 0x4, offset = 0x4, fixed_abs, tag = 'smem constant byte address 0x4 - core index']
  #allocation1 [shape = 'u32[144,128]{1,0:T(1,128)}', space=vmem, size = 0x12000, scoped, tag = 'internal scratch']
  #allocation2 [shape = 'f32[8,128]{1,0:T(8,128)}', space=vmem, size = 0x1000, scoped, tag = 'scratch operand']
  %s0 = inlined_call_operand.hbm [shape: f32[8,128], index: 0, kind: input, shape index: {}]
  %s1 = inlined_call_operand.hbm [shape: f32[128,128], index: 1, kind: input, shape index: {}]
  %s2 = inlined_call_operand.hbm [shape: f32[1,128], index: 2, kind: input, shape index: {}]
  %s3 = inlined_call_operand.hbm [shape: f32[128,128], index: 3, kind: input, shape index: {}]
  %s4 = inlined_call_operand.hbm [shape: f32[1,128], index: 4, kind: input, shape index: {}]
  %s5 = inlined_call_operand.hbm [shape: f32[8,128], index: 5, kind: output, shape index: {}]
  %s6 = sld [smem:[#allocation0]]
  $region58: #{tpu_custom_call.1} parent=0
    _
  %s8 = ssub.s32 1, %s6
  %s9 = scalar_select 0, %s8, %s6
  $region1: #{tpu_custom_call.1} parent=0
    #allocation3 [shape = 'u8[4096]{0}', space=vmem, size = 0x1000, scoped, tag = 'input window, operand 0, single buffered']
    #allocation4 [shape = 's32[1]{0}', space=sflag, size = 0x4, scoped, tag = 'scoped memory for tpu_custom_call.1']
    #allocation5 [shape = 's32[1]{0}', space=sflag, size = 0x4, scoped, tag = 'scoped memory for tpu_custom_call.1']
    #allocation6 [shape = 'u8[65536]{0}', space=vmem, size = 0x10000, scoped, tag = 'input window, operand 1, single buffered']
    #allocation7 [shape = 's32[1]{0}', space=sflag, size = 0x4, scoped, tag = 'scoped memory for tpu_custom_call.1']
    #allocation8 [shape = 'u8[512]{0}', space=vmem, size = 0x400, scoped, tag = 'input window, operand 2, single buffered']
    #allocation9 [shape = 'u8[65536]{0}', space=vmem, size = 0x10000, scoped, tag = 'input window, operand 3, single buffered']
    #allocation10 [shape = 's32[1]{0}', space=sflag, size = 0x4, scoped, tag = 'scoped memory for tpu_custom_call.1']
    #allocation11 [shape = 'u8[512]{0}', space=vmem, size = 0x400, scoped, tag = 'input window, operand 4, single buffered']
    #allocation12 [shape = 'u8[4096]{0}', space=vmem, size = 0x1000, scoped, tag = 'output window, operand 0, single buffered']
    %10 = vsyncpa [#allocation4], 0
    %11 = vsyncpa [#allocation7], 0
    %12 = vsyncpa [#allocation10], 0
    %13 = vsyncpa [#allocation5], 0
    // Predicated region
    $region2: #{tpu_custom_call.1} parent=1 // pred_check
      _
    $region3: #{tpu_custom_call.1} parent=1 // pred_check_branch
      %15 = sbr.rel (0) target = $region5
    $region4: #{tpu_custom_call.1} parent=1 // pred_region
      %s17 = ssub.s32 128, 128
      %18 = vsyncadd [#allocation4], %s17
      %s20 = sshll.u32 [#allocation3], 4
      %s21 = int_to_ptr.vmem [resolvable:$true] %s20
      %23 = dma.hbm_to_vmem [thread:$0]  %s0, 128, %s21, [#allocation4]
    $region5: #{tpu_custom_call.1} parent=1 // pred_fallthru
      _
    // Predicated region
    $region6: #{tpu_custom_call.1} parent=1 // pred_check
      _
    $region7: #{tpu_custom_call.1} parent=1 // pred_check_branch
      %25 = sbr.rel (0) target = $region9
    $region8: #{tpu_custom_call.1} parent=1 // pred_region
      %s27 = ssub.s32 2048, 2048
      %28 = vsyncadd [#allocation7], %s27
      %s29 = sshll.u32 [#allocation6], 4
      %s30 = int_to_ptr.vmem [resolvable:$true] %s29
      %35 = dma.hbm_to_vmem [thread:$0]  %s1, 2048, %s30, [#allocation7], 128, 128, 8
    $region9: #{tpu_custom_call.1} parent=1 // pred_fallthru
      _
    // Predicated region
    $region10: #{tpu_custom_call.1} parent=1 // pred_check
      _
    $region11: #{tpu_custom_call.1} parent=1 // pred_check_branch
      %37 = sbr.rel (0) target = $region13
    $region12: #{tpu_custom_call.1} parent=1 // pred_region
      %s39 = ssub.s32 16, 16
      %40 = vsyncadd [#allocation7], %s39
      %s42 = sshll.u32 [#allocation8], 4
      %s43 = int_to_ptr.vmem [resolvable:$true] %s42
      %45 = dma.hbm_to_vmem [thread:$0]  %s2, 16, %s43, [#allocation7]
    $region13: #{tpu_custom_call.1} parent=1 // pred_fallthru
      _
    // Predicated region
    $region14: #{tpu_custom_call.1} parent=1 // pred_check
      _
    $region15: #{tpu_custom_call.1} parent=1 // pred_check_branch
      %47 = sbr.rel (0) target = $region17
    $region16: #{tpu_custom_call.1} parent=1 // pred_region
      %s49 = ssub.s32 2048, 2048
      %50 = vsyncadd [#allocation10], %s49
      %s51 = sshll.u32 [#allocation9], 4
      %s52 = int_to_ptr.vmem [resolvable:$true] %s51
      %57 = dma.hbm_to_vmem [thread:$0]  %s3, 2048, %s52, [#allocation10], 128, 128, 8
    $region17: #{tpu_custom_call.1} parent=1 // pred_fallthru
      _
    // Predicated region
    $region18: #{tpu_custom_call.1} parent=1 // pred_check
      _
    $region19: #{tpu_custom_call.1} parent=1 // pred_check_branch
      %59 = sbr.rel (0) target = $region21
    $region20: #{tpu_custom_call.1} parent=1 // pred_region
      %s61 = ssub.s32 16, 16
      %62 = vsyncadd [#allocation10], %s61
      %s64 = sshll.u32 [#allocation11], 4
      %s65 = int_to_ptr.vmem [resolvable:$true] %s64
      %67 = dma.hbm_to_vmem [thread:$0]  %s4, 16, %s65, [#allocation10]
    $region21: #{tpu_custom_call.1} parent=1 // pred_fallthru
      _
    // Predicated region
    $region22: #{tpu_custom_call.1} parent=1 // pred_check
      _
    $region23: #{tpu_custom_call.1} parent=1 // pred_check_branch
      %69 = sbr.rel (0) target = $region25
    $region24: #{tpu_custom_call.1} parent=1 // pred_region
      %70 = dma.done [#allocation4], 128
    $region25: #{tpu_custom_call.1} parent=1 // pred_fallthru
      _
    // Predicated region
    $region26: #{tpu_custom_call.1} parent=1 // pred_check
      _
    $region27: #{tpu_custom_call.1} parent=1 // pred_check_branch
      %72 = sbr.rel (0) target = $region29
    $region28: #{tpu_custom_call.1} parent=1 // pred_region
      %73 = dma.done [#allocation7], 2048
    $region29: #{tpu_custom_call.1} parent=1 // pred_fallthru
      _
    // Predicated region
    $region30: #{tpu_custom_call.1} parent=1 // pred_check
      _
    $region31: #{tpu_custom_call.1} parent=1 // pred_check_branch
      %75 = sbr.rel (0) target = $region33
    $region32: #{tpu_custom_call.1} parent=1 // pred_region
      %76 = dma.done [#allocation7], 16
    $region33: #{tpu_custom_call.1} parent=1 // pred_fallthru
      _
    // Predicated region
    $region34: #{tpu_custom_call.1} parent=1 // pred_check
      _
    $region35: #{tpu_custom_call.1} parent=1 // pred_check_branch
      %78 = sbr.rel (0) target = $region37
    $region36: #{tpu_custom_call.1} parent=1 // pred_region
      %79 = dma.done [#allocation10], 2048
    $region37: #{tpu_custom_call.1} parent=1 // pred_fallthru
      _
    // Predicated region
    $region38: #{tpu_custom_call.1} parent=1 // pred_check
      _
    $region39: #{tpu_custom_call.1} parent=1 // pred_check_branch
      %81 = sbr.rel (0) target = $region41
    $region40: #{tpu_custom_call.1} parent=1 // pred_region
      %82 = dma.done [#allocation10], 16
    $region41: #{tpu_custom_call.1} parent=1 // pred_fallthru
      _
    %p83 = scmp.eq.s32.totalorder 0, 0
    // Predicated region
    $region42: #{tpu_custom_call.1} parent=1 // pred_check
      %p84 = pneg %p83
    $region43: #{tpu_custom_call.1} parent=1 // pred_check_branch
      %86 = sbr.rel (%p84) target = $region45
    $region44: #{tpu_custom_call.1} parent=1 // pred_region
      %87 = vst [vmem:[#allocation2] sm:$0xff] 0.0
    $region45: #{tpu_custom_call.1} parent=1 // pred_fallthru
      _
    %v88 = vld [vmem:[#allocation3] sm:$0xff]
    %v89 = vld [vmem:[#allocation6] sm:$0xff]
    %v90 = vld [vmem:[#allocation6 + $0x8] sm:$0xff]
    %v91 = vld [vmem:[#allocation6 + $0x10] sm:$0xff]
    %v92 = vld [vmem:[#allocation6 + $0x18] sm:$0xff]
    %v93 = vld [vmem:[#allocation6 + $0x20] sm:$0xff]
    %v94 = vld [vmem:[#allocation6 + $0x28] sm:$0xff]
    %v95 = vld [vmem:[#allocation6 + $0x30] sm:$0xff]
    %v96 = vld [vmem:[#allocation6 + $0x38] sm:$0xff]
    %v97 = vld [vmem:[#allocation6 + $0x40] sm:$0xff]
    %v98 = vld [vmem:[#allocation6 + $0x48] sm:$0xff]
    %v99 = vld [vmem:[#allocation6 + $0x50] sm:$0xff]
    %v100 = vld [vmem:[#allocation6 + $0x58] sm:$0xff]
    %v101 = vld [vmem:[#allocation6 + $0x60] sm:$0xff]
    %v102 = vld [vmem:[#allocation6 + $0x68] sm:$0xff]
    %v103 = vld [vmem:[#allocation6 + $0x70] sm:$0xff]
    %v104 = vld [vmem:[#allocation6 + $0x78] sm:$0xff]
    %v105 = vld [vmem:[#allocation8] sm:$0x1]
    %v107 = vlaneseq
    %v108 = vshrl.u32 %v107, 7
    %v109 = vsub.s32 0, %v108
    %v110 = vrot.slane %v105, %v109
    %112 = vmatprep.subr.mxu0 0.0
    %113 = vmatpush1.msra.mxu0 %v89
    %114 = vmatprep.subr.mxu0 0.0
    %115 = vmatpush1.msra.mxu0 %v90
    %116 = vmatprep.subr.mxu0 0.0
    %117 = vmatpush1.msra.mxu0 %v91
    %118 = vmatprep.subr.mxu0 0.0
    %119 = vmatpush1.msra.mxu0 %v92
    %120 = vmatprep.subr.mxu0 0.0
    %121 = vmatpush1.msra.mxu0 %v93
    %122 = vmatprep.subr.mxu0 0.0
    %123 = vmatpush1.msra.mxu0 %v94
    %124 = vmatprep.subr.mxu0 0.0
    %125 = vmatpush1.msra.mxu0 %v95
    %126 = vmatprep.subr.mxu0 0.0
    %127 = vmatpush1.msra.mxu0 %v96
    %128 = vmatprep.subr.mxu0 0.0
    %129 = vmatpush1.msra.mxu0 %v97
    %130 = vmatprep.subr.mxu0 0.0
    %131 = vmatpush1.msra.mxu0 %v98
    %132 = vmatprep.subr.mxu0 0.0
    %133 = vmatpush1.msra.mxu0 %v99
    %134 = vmatprep.subr.mxu0 0.0
    %135 = vmatpush1.msra.mxu0 %v100
    %136 = vmatprep.subr.mxu0 0.0
    %137 = vmatpush1.msra.mxu0 %v101
    %138 = vmatprep.subr.mxu0 0.0
    %139 = vmatpush1.msra.mxu0 %v102
    %140 = vmatprep.subr.mxu0 0.0
    %141 = vmatpush1.msra.mxu0 %v103
    %142 = vmatprep.subr.mxu0 0.0
    %143 = vmatpush1.msra.mxu0 %v104
    %144 = vmatprep.subr.mxu0 0.0
    %145 = vmatpush1.msra.mxu0 0.0
    %146 = vmatprep.subr.mxu0 0.0
    %147 = vmatpush1.msra.mxu0 0.0
    %148 = vmatprep.subr.mxu0 0.0
    %149 = vmatpush1.msra.mxu0 0.0
    %150 = vmatprep.subr.mxu0 0.0
    %151 = vmatpush1.msra.mxu0 0.0
    %152 = vmatprep.subr.mxu0 0.0
    %153 = vmatpush1.msra.mxu0 0.0
    %154 = vmatprep.subr.mxu0 0.0
    %155 = vmatpush1.msra.mxu0 0.0
    %156 = vmatprep.subr.mxu0 0.0
    %157 = vmatpush1.msra.mxu0 0.0
    %158 = vmatprep.subr.mxu0 0.0
    %159 = vmatpush1.msra.mxu0 0.0
    %160 = vmatprep.subr.mxu0 0.0
    %161 = vmatpush1.msra.mxu0 0.0
    %162 = vmatprep.subr.mxu0 0.0
    %163 = vmatpush1.msra.mxu0 0.0
    %164 = vmatprep.subr.mxu0 0.0
    %165 = vmatpush1.msra.mxu0 0.0
    %166 = vmatprep.subr.mxu0 0.0
    %167 = vmatpush1.msra.mxu0 0.0
    %168 = vmatprep.subr.mxu0 0.0
    %169 = vmatpush1.msra.mxu0 0.0
    %170 = vmatprep.subr.mxu0 0.0
    %171 = vmatpush1.msra.mxu0 0.0
    %172 = vmatprep.subr.mxu0 0.0
    %173 = vmatpush1.msra.mxu0 0.0
    %174 = vmatprep.subr.mxu0 0.0
    %175 = vmatpush1.msra.mxu0 0.0
    %176 = vmatprep.mubr.f32.mxu0 0.0
    %177 = vmatmul.mubr.f32.gmra.mrb[0].mxu0 %v88
    %v178 = vpop.f32.mrb[0].mxu0
    %v179 = vadd.f32 %v110, %v178
    %v180 = vpop.f32.mrb[0].mxu0
    %181 = vdwg.mxu0
    %v182 = vmax.f32 %v179, 0.0
    %v183 = vld [vmem:[#allocation2] sm:$0xff]
    %v184 = vld [vmem:[#allocation9] sm:$0xff]
    %v185 = vld [vmem:[#allocation9 + $0x8] sm:$0xff]
    %v186 = vld [vmem:[#allocation9 + $0x10] sm:$0xff]
    %v187 = vld [vmem:[#allocation9 + $0x18] sm:$0xff]
    %v188 = vld [vmem:[#allocation9 + $0x20] sm:$0xff]
    %v189 = vld [vmem:[#allocation9 + $0x28] sm:$0xff]
    %v190 = vld [vmem:[#allocation9 + $0x30] sm:$0xff]
    %v191 = vld [vmem:[#allocation9 + $0x38] sm:$0xff]
    %v192 = vld [vmem:[#allocation9 + $0x40] sm:$0xff]
    %v193 = vld [vmem:[#allocation9 + $0x48] sm:$0xff]
    %v194 = vld [vmem:[#allocation9 + $0x50] sm:$0xff]
    %v195 = vld [vmem:[#allocation9 + $0x58] sm:$0xff]
    %v196 = vld [vmem:[#allocation9 + $0x60] sm:$0xff]
    %v197 = vld [vmem:[#allocation9 + $0x68] sm:$0xff]
    %v198 = vld [vmem:[#allocation9 + $0x70] sm:$0xff]
    %v199 = vld [vmem:[#allocation9 + $0x78] sm:$0xff]
    %200 = vmatprep.subr.mxu0 0.0
    %201 = vmatpush1.msra.mxu0 %v184
    %202 = vmatprep.subr.mxu0 0.0
    %203 = vmatpush1.msra.mxu0 %v185
    %204 = vmatprep.subr.mxu0 0.0
    %205 = vmatpush1.msra.mxu0 %v186
    %206 = vmatprep.subr.mxu0 0.0
    %207 = vmatpush1.msra.mxu0 %v187
    %208 = vmatprep.subr.mxu0 0.0
    %209 = vmatpush1.msra.mxu0 %v188
    %210 = vmatprep.subr.mxu0 0.0
    %211 = vmatpush1.msra.mxu0 %v189
    %212 = vmatprep.subr.mxu0 0.0
    %213 = vmatpush1.msra.mxu0 %v190
    %214 = vmatprep.subr.mxu0 0.0
    %215 = vmatpush1.msra.mxu0 %v191
    %216 = vmatprep.subr.mxu0 0.0
    %217 = vmatpush1.msra.mxu0 %v192
    %218 = vmatprep.subr.mxu0 0.0
    %219 = vmatpush1.msra.mxu0 %v193
    %220 = vmatprep.subr.mxu0 0.0
    %221 = vmatpush1.msra.mxu0 %v194
    %222 = vmatprep.subr.mxu0 0.0
    %223 = vmatpush1.msra.mxu0 %v195
    %224 = vmatprep.subr.mxu0 0.0
    %225 = vmatpush1.msra.mxu0 %v196
    %226 = vmatprep.subr.mxu0 0.0
    %227 = vmatpush1.msra.mxu0 %v197
    %228 = vmatprep.subr.mxu0 0.0
    %229 = vmatpush1.msra.mxu0 %v198
    %230 = vmatprep.subr.mxu0 0.0
    %231 = vmatpush1.msra.mxu0 %v199
    %232 = vmatprep.subr.mxu0 0.0
    %233 = vmatpush1.msra.mxu0 0.0
    %234 = vmatprep.subr.mxu0 0.0
    %235 = vmatpush1.msra.mxu0 0.0
    %236 = vmatprep.subr.mxu0 0.0
    %237 = vmatpush1.msra.mxu0 0.0
    %238 = vmatprep.subr.mxu0 0.0
    %239 = vmatpush1.msra.mxu0 0.0
    %240 = vmatprep.subr.mxu0 0.0
    %241 = vmatpush1.msra.mxu0 0.0
    %242 = vmatprep.subr.mxu0 0.0
    %243 = vmatpush1.msra.mxu0 0.0
    %244 = vmatprep.subr.mxu0 0.0
    %245 = vmatpush1.msra.mxu0 0.0
    %246 = vmatprep.subr.mxu0 0.0
    %247 = vmatpush1.msra.mxu0 0.0
    %248 = vmatprep.subr.mxu0 0.0
    %249 = vmatpush1.msra.mxu0 0.0
    %250 = vmatprep.subr.mxu0 0.0
    %251 = vmatpush1.msra.mxu0 0.0
    %252 = vmatprep.subr.mxu0 0.0
    %253 = vmatpush1.msra.mxu0 0.0
    %254 = vmatprep.subr.mxu0 0.0
    %255 = vmatpush1.msra.mxu0 0.0
    %256 = vmatprep.subr.mxu0 0.0
    %257 = vmatpush1.msra.mxu0 0.0
    %258 = vmatprep.subr.mxu0 0.0
    %259 = vmatpush1.msra.mxu0 0.0
    %260 = vmatprep.subr.mxu0 0.0
    %261 = vmatpush1.msra.mxu0 0.0
    %262 = vmatprep.subr.mxu0 0.0
    %263 = vmatpush1.msra.mxu0 0.0
    %264 = vmatprep.mubr.f32.mxu0 0.0
    %265 = vmatmul.mubr.f32.gmra.mrb[0].mxu0 %v182
    %v266 = vpop.f32.mrb[0].mxu0
    %v267 = vadd.f32 0.0, %v266
    %v268 = vpop.f32.mrb[0].mxu0
    %269 = vdwg.mxu0
    %v270 = vadd.f32 %v183, %v267
    %271 = vst [vmem:[#allocation2] sm:$0xff] %v270
    // Predicated region
    $region46: #{tpu_custom_call.1} parent=1 // pred_check
      %p272 = pneg %p83
    $region47: #{tpu_custom_call.1} parent=1 // pred_check_branch
      %274 = sbr.rel (%p272) target = $region49
    $region48: #{tpu_custom_call.1} parent=1 // pred_region
      %v275 = vld [vmem:[#allocation2] sm:$0xff]
      %v276 = vld [vmem:[#allocation11] sm:$0x1]
      %v278 = vlaneseq
      %v279 = vshrl.u32 %v278, 7
      %v280 = vsub.s32 0, %v279
      %v281 = vrot.slane %v276, %v280
      %v283 = vadd.f32 %v275, %v281
      %284 = vst [vmem:[#allocation12] sm:$0xff] %v283
    $region49: #{tpu_custom_call.1} parent=1 // pred_fallthru
      _
    // Predicated region
    $region50: #{tpu_custom_call.1} parent=1 // pred_check
      _
    $region51: #{tpu_custom_call.1} parent=1 // pred_check_branch
      %286 = sbr.rel (0) target = $region53
    $region52: #{tpu_custom_call.1} parent=1 // pred_region
      %s288 = ssub.s32 128, 128
      %289 = vsyncadd [#allocation5], %s288
      %s291 = sshll.u32 [#allocation12], 4
      %s292 = int_to_ptr.vmem [resolvable:$true] %s291
      %294 = dma.vmem_to_hbm [thread:$0]  %s292, 128, %s5, [#allocation5]
    $region53: #{tpu_custom_call.1} parent=1 // pred_fallthru
      _
    // Predicated region
    $region54: #{tpu_custom_call.1} parent=1 // pred_check
      _
    $region55: #{tpu_custom_call.1} parent=1 // pred_check_branch
      %296 = sbr.rel (0) target = $region57
    $region56: #{tpu_custom_call.1} parent=1 // pred_region
      %297 = dma.done [#allocation5], 128
    $region57: #{tpu_custom_call.1} parent=1 // pred_fallthru
      _
    %298 = vsyncpa [#allocation4], 1
    %299 = vsyncpa [#allocation7], 1
    %300 = vsyncpa [#allocation10], 1
    %301 = vsyncpa [#allocation5], 1

</llo_original>
